<compile_context>
chip_gen: v6e
topology: v6e:2x2x1
jax: 0.10.0
libtpu: 0.0.40
codegen_flags: <defaults>
</compile_context>

<pallas_src>
import functools

import jax
import jax.numpy as jnp
import numpy as np
from jax.experimental import pallas as pl
from jax.experimental.pallas import tpu as pltpu

# ---------------- problem sizes (small, consistent with the module) -----------
B = 2       # batch
T = 8       # motion sequence length
D = 32      # latent_dim
TE = 16     # time_embed_dim
EPS = 1e-5  # nn.LayerNorm default eps


def _kernel(act_ref, p_ref, out_ref, *, b, t, d, te):
    f32 = jnp.float32
    bd = b * d
    bte = b * te

    # ---- activations: h lane-packed, emb appended as one sublane row --------
    h = act_ref[0:t, :]                       # (T, B*D)
    emb = act_ref[t:t + 1, 0:bte]             # (1, B*TE)

    # ---- packed parameter slab: static slices ---------------------------------
    gs = p_ref[0:1, :]                        # LayerNorm gamma, lane-tiled per batch
    bs = p_ref[1:2, :]                        # LayerNorm beta
    besc = p_ref[2:3, :]                      # emb-Linear bias (scale half)
    besh = p_ref[3:4, :]                      # emb-Linear bias (shift half)
    bo = p_ref[4:5, :]                        # out-Linear bias
    r = 8
    m_grp = p_ref[r:r + bd, :]; r += bd       # block-diag ones/D  (B*D, B*D)
    wo = p_ref[r:r + bd, :]; r += bd          # block-diag out Linear (B*D, B*D)
    w_sc = p_ref[r:r + bte, :]; r += bte      # block-diag emb->scale (B*TE, B*D)
    w_sh = p_ref[r:r + bte, :]                # block-diag emb->shift (B*TE, B*D)

    # ---- emb branch: SiLU -> Linear(time_embed_dim, 2*latent_dim) ------------
    e = emb * jax.nn.sigmoid(emb)
    scale = jnp.dot(e, w_sc, preferred_element_type=f32) + besc   # (1, B*D)
    shift = jnp.dot(e, w_sh, preferred_element_type=f32) + besh   # (1, B*D)

    # ---- LayerNorm over each batch's own D lanes (reductions on the MXU) -----
    mu = jnp.dot(h, m_grp, preferred_element_type=f32)            # per-lane group mean
    xc = h - mu
    var = jnp.dot(xc * xc, m_grp, preferred_element_type=f32)     # per-lane group var
    hn = xc * jax.lax.rsqrt(var + EPS) * gs + bs

    # ---- StylizationBlock epilogue: (1+scale)*norm + shift, SiLU, Linear ------
    hh = hn * (1.0 + scale) + shift
    hh = hh * jax.nn.sigmoid(hh)              # SiLU; Dropout is identity (eval)
    out = jnp.dot(hh, wo, preferred_element_type=f32) + bo        # zero_module Linear
    out_ref[...] = out.astype(out_ref.dtype)


def _block_diag(w, reps):
    """Block-diagonal replication of w along the batch-lane groups."""
    return jnp.kron(jnp.eye(reps, dtype=w.dtype), w)


def _pack_params(p, b, d, te):
    """Pack all parameters into one (8 + 2*B*D + 2*B*TE, B*D) f32 slab."""
    bd = b * d
    tile = lambda v: jnp.tile(v, b).reshape(1, bd)          # (d,) -> (1, B*D)
    vec_rows = jnp.concatenate([
        tile(p["gs"]), tile(p["bs"]),
        tile(p["be"][:d]), tile(p["be"][d:]),
        tile(p["bo"]),
        jnp.zeros((3, bd), jnp.float32),                     # pad to 8-row boundary
    ], axis=0)                                               # (8, B*D)
    m_grp = _block_diag(jnp.full((d, d), 1.0 / d, jnp.float32), b)   # (B*D, B*D)
    wo_bd = _block_diag(p["wo"], b)                                  # (B*D, B*D)
    wsc_bd = _block_diag(p["we"][:, :d], b)                          # (B*TE, B*D)
    wsh_bd = _block_diag(p["we"][:, d:], b)                          # (B*TE, B*D)
    return jnp.concatenate([vec_rows, m_grp, wo_bd, wsc_bd, wsh_bd], axis=0)


def stylization_block(h, emb, params):
    """h: (B, T, D)   emb: (B, TE)   -> (B, T, D)  (no residual, as in the module)."""
    b, t, d = h.shape
    te = emb.shape[1]
    bd, bte = b * d, b * te
    assert bte <= bd, "time_embed_dim must fit in the B*D lane slab"

    # one parameter slab (built once per weight set in practice)
    p_slab = _pack_params(params, b, d, te)                   # (8+2*bd+2*bte, bd)

    # lane-pack activations: h -> (T, B*D); emb as one extra sublane row
    h_packed = jnp.transpose(h, (1, 0, 2)).reshape(t, bd)
    emb_row = jnp.pad(emb.reshape(1, bte), ((0, 0), (0, bd - bte)))
    act = jnp.concatenate([h_packed, emb_row], axis=0)        # (T+1, B*D)

    kernel = functools.partial(_kernel, b=b, t=t, d=d, te=te)

    def full(arr):
        nd = arr.ndim
        return pl.BlockSpec(arr.shape, lambda i, _nd=nd: (0,) * _nd)

    out = pl.pallas_call(
        kernel,
        out_shape=jax.ShapeDtypeStruct((t, bd), h.dtype),
        grid_spec=pltpu.PrefetchScalarGridSpec(
            num_scalar_prefetch=0,
            # Single grid step: the kernel is fixed-overhead bound at these
            # sizes.  On v7x with real T, split T over a "parallel" grid axis.
            grid=(1,),
            in_specs=[full(act), full(p_slab)],
            out_specs=pl.BlockSpec((t, bd), lambda i: (0, 0)),
        ),
        compiler_params=pltpu.CompilerParams(
            dimension_semantics=("arbitrary",)),
    )(act, p_slab)

    return jnp.transpose(out.reshape(t, b, d), (1, 0, 2))     # back to (B, T, D)


# ---------------- pure-JAX reference (mirrors the PyTorch forward) -------------
def reference(h, emb, p):
    def ln(v, g, b_):
        mu = v.mean(-1, keepdims=True)
        var = ((v - mu) ** 2).mean(-1, keepdims=True)
        return (v - mu) / jnp.sqrt(var + EPS) * g + b_

    d = h.shape[-1]
    eo = jax.nn.silu(emb) @ p["we"] + p["be"]                 # (B, 2D)
    scale = eo[:, :d][:, None, :]
    shift = eo[:, d:][:, None, :]
    hh = ln(h, p["gs"], p["bs"]) * (1.0 + scale) + shift
    hh = jax.nn.silu(hh)                                      # Dropout = identity (eval)
    return hh @ p["wo"] + p["bo"]


def make_params(key):
    ks = jax.random.split(key, 6)
    f32 = jnp.float32
    nrm = lambda k, shape, s=0.05: s * jax.random.normal(k, shape, f32)
    return {
        # LayerNorm affine (PyTorch init weight=1 / bias=0; perturbed so the
        # affine path is exercised).
        "gs": 1.0 + nrm(ks[0], (D,), 0.1), "bs": nrm(ks[1], (D,)),
        # emb_layers Linear: time_embed_dim -> 2*latent_dim (stored (in, out))
        "we": nrm(ks[2], (TE, 2 * D)), "be": nrm(ks[3], (2 * D,)),
        # zero_module(nn.Linear(D, D)) is exactly zero at init; use NONZERO
        # values here so the assertion is not vacuous (forward math identical).
        "wo": 0.05 * jnp.eye(D, dtype=f32) + nrm(ks[4], (D, D), 0.02),
        "bo": nrm(ks[5], (D,)),
    }


if __name__ == "__main__":
    key = jax.random.PRNGKey(0)
    kh, ke, kp = jax.random.split(key, 3)

    h = jax.random.normal(kh, (B, T, D), jnp.float32)
    emb = jax.random.normal(ke, (B, TE), jnp.float32)
    params = make_params(kp)

    out = stylization_block(h, emb, params)
    out = jax.block_until_ready(out)

    ref = reference(h, emb, params)
    np.testing.assert_allclose(np.asarray(out), np.asarray(ref),
                               rtol=3e-3, atol=3e-3)

    print("KERNEL_OK")
</pallas_src>

<mosaic_0001>
module attributes {stable_mosaic.version = 11 : i64} {
  func.func @_kernel(%arg0: i32, %arg1: memref<9x64xf32, #tpu.memory_space<vmem>>, %arg2: memref<200x64xf32, #tpu.memory_space<vmem>>, %arg3: memref<8x64xf32, #tpu.memory_space<vmem>>) attributes {dimension_semantics = [#tpu.dimension_semantics<arbitrary>], iteration_bounds = array<i64: 1>, scalar_prefetch = 0 : i64, scratch_operands = 0 : i64, tpu.core_type = #tpu.core_type<tc>, window_params = [{pipeline_mode = #tpu.pipeline_mode<synchronous>, transform_indices = @transform_0, window_bounds = array<i64: 9, 64>}, {pipeline_mode = #tpu.pipeline_mode<synchronous>, transform_indices = @transform_1, window_bounds = array<i64: 200, 64>}, {pipeline_mode = #tpu.pipeline_mode<synchronous>, transform_indices = @transform_2, window_bounds = array<i64: 8, 64>}]} {
    %c0 = arith.constant 0 : index
    %c0_0 = arith.constant 0 : index
    %0 = vector.load %arg1[%c0, %c0_0] : memref<9x64xf32, #tpu.memory_space<vmem>>, vector<8x64xf32>
    %c8 = arith.constant 8 : index
    %c0_1 = arith.constant 0 : index
    %1 = vector.load %arg1[%c8, %c0_1] : memref<9x64xf32, #tpu.memory_space<vmem>>, vector<1x32xf32>
    %c0_2 = arith.constant 0 : index
    %c0_3 = arith.constant 0 : index
    %2 = vector.load %arg2[%c0_2, %c0_3] : memref<200x64xf32, #tpu.memory_space<vmem>>, vector<1x64xf32>
    %c1 = arith.constant 1 : index
    %c0_4 = arith.constant 0 : index
    %3 = vector.load %arg2[%c1, %c0_4] : memref<200x64xf32, #tpu.memory_space<vmem>>, vector<1x64xf32>
    %c2 = arith.constant 2 : index
    %c0_5 = arith.constant 0 : index
    %4 = vector.load %arg2[%c2, %c0_5] : memref<200x64xf32, #tpu.memory_space<vmem>>, vector<1x64xf32>
    %c3 = arith.constant 3 : index
    %c0_6 = arith.constant 0 : index
    %5 = vector.load %arg2[%c3, %c0_6] : memref<200x64xf32, #tpu.memory_space<vmem>>, vector<1x64xf32>
    %c4 = arith.constant 4 : index
    %c0_7 = arith.constant 0 : index
    %6 = vector.load %arg2[%c4, %c0_7] : memref<200x64xf32, #tpu.memory_space<vmem>>, vector<1x64xf32>
    %c8_8 = arith.constant 8 : index
    %c0_9 = arith.constant 0 : index
    %7 = vector.load %arg2[%c8_8, %c0_9] : memref<200x64xf32, #tpu.memory_space<vmem>>, vector<64x64xf32>
    %c72 = arith.constant 72 : index
    %c0_10 = arith.constant 0 : index
    %8 = vector.load %arg2[%c72, %c0_10] : memref<200x64xf32, #tpu.memory_space<vmem>>, vector<64x64xf32>
    %c136 = arith.constant 136 : index
    %c0_11 = arith.constant 0 : index
    %9 = vector.load %arg2[%c136, %c0_11] : memref<200x64xf32, #tpu.memory_space<vmem>>, vector<32x64xf32>
    %c168 = arith.constant 168 : index
    %c0_12 = arith.constant 0 : index
    %10 = vector.load %arg2[%c168, %c0_12] : memref<200x64xf32, #tpu.memory_space<vmem>>, vector<32x64xf32>
    %11 = arith.negf %1 : vector<1x32xf32>
    %12 = math.exp %11 : vector<1x32xf32>
    %cst = arith.constant 1.000000e+00 : f32
    %13 = vector.broadcast %cst : f32 to vector<1x32xf32>
    %14 = arith.addf %13, %12 : vector<1x32xf32>
    %15 = arith.divf %13, %14 : vector<1x32xf32>
    %16 = arith.mulf %1, %15 : vector<1x32xf32>
    %cst_13 = arith.constant dense<0.000000e+00> : vector<1x64xf32>
    %17 = tpu.matmul %16, %9, %cst_13 {dimension_numbers = #tpu.dot_dimension_numbers<[1], [0], [0], [1], [0, 0, 1, 1], [], []>} : vector<1x32xf32>, vector<32x64xf32>, vector<1x64xf32> -> vector<1x64xf32>
    %18 = arith.addf %17, %4 : vector<1x64xf32>
    %cst_14 = arith.constant dense<0.000000e+00> : vector<1x64xf32>
    %19 = tpu.matmul %16, %10, %cst_14 {dimension_numbers = #tpu.dot_dimension_numbers<[1], [0], [0], [1], [0, 0, 1, 1], [], []>} : vector<1x32xf32>, vector<32x64xf32>, vector<1x64xf32> -> vector<1x64xf32>
    %20 = arith.addf %19, %5 : vector<1x64xf32>
    %cst_15 = arith.constant dense<0.000000e+00> : vector<8x64xf32>
    %21 = tpu.matmul %0, %7, %cst_15 {dimension_numbers = #tpu.dot_dimension_numbers<[1], [0], [0], [1], [0, 0, 1, 1], [], []>} : vector<8x64xf32>, vector<64x64xf32>, vector<8x64xf32> -> vector<8x64xf32>
    %22 = arith.subf %0, %21 : vector<8x64xf32>
    %23 = arith.mulf %22, %22 : vector<8x64xf32>
    %cst_16 = arith.constant dense<0.000000e+00> : vector<8x64xf32>
    %24 = tpu.matmul %23, %7, %cst_16 {dimension_numbers = #tpu.dot_dimension_numbers<[1], [0], [0], [1], [0, 0, 1, 1], [], []>} : vector<8x64xf32>, vector<64x64xf32>, vector<8x64xf32> -> vector<8x64xf32>
    %cst_17 = arith.constant 9.99999974E-6 : f32
    %25 = vector.broadcast %cst_17 : f32 to vector<8x64xf32>
    %26 = arith.addf %24, %25 : vector<8x64xf32>
    %27 = math.rsqrt %26 : vector<8x64xf32>
    %28 = arith.mulf %22, %27 : vector<8x64xf32>
    %29 = vector.broadcast %2 : vector<1x64xf32> to vector<8x64xf32>
    %30 = arith.mulf %28, %29 : vector<8x64xf32>
    %31 = vector.broadcast %3 : vector<1x64xf32> to vector<8x64xf32>
    %32 = arith.addf %30, %31 : vector<8x64xf32>
    %cst_18 = arith.constant 1.000000e+00 : f32
    %33 = vector.broadcast %cst_18 : f32 to vector<1x64xf32>
    %34 = arith.addf %33, %18 : vector<1x64xf32>
    %35 = vector.broadcast %34 : vector<1x64xf32> to vector<8x64xf32>
    %36 = arith.mulf %32, %35 : vector<8x64xf32>
    %37 = vector.broadcast %20 : vector<1x64xf32> to vector<8x64xf32>
    %38 = arith.addf %36, %37 : vector<8x64xf32>
    %39 = arith.negf %38 : vector<8x64xf32>
    %40 = math.exp %39 : vector<8x64xf32>
    %cst_19 = arith.constant 1.000000e+00 : f32
    %41 = vector.broadcast %cst_19 : f32 to vector<8x64xf32>
    %42 = arith.addf %41, %40 : vector<8x64xf32>
    %43 = arith.divf %41, %42 : vector<8x64xf32>
    %44 = arith.mulf %38, %43 : vector<8x64xf32>
    %cst_20 = arith.constant dense<0.000000e+00> : vector<8x64xf32>
    %45 = tpu.matmul %44, %8, %cst_20 {dimension_numbers = #tpu.dot_dimension_numbers<[1], [0], [0], [1], [0, 0, 1, 1], [], []>} : vector<8x64xf32>, vector<64x64xf32>, vector<8x64xf32> -> vector<8x64xf32>
    %46 = vector.broadcast %6 : vector<1x64xf32> to vector<8x64xf32>
    %47 = arith.addf %45, %46 : vector<8x64xf32>
    %c0_21 = arith.constant 0 : index
    %c0_22 = arith.constant 0 : index
    %48 = vector.load %arg3[%c0_21, %c0_22] : memref<8x64xf32, #tpu.memory_space<vmem>>, vector<8x64xf32>
    tpu.vector_store %arg3[%c0_21, %c0_22], %47 {strides = array<i32>} : memref<8x64xf32, #tpu.memory_space<vmem>>, vector<8x64xf32>,
    return
  }
  func.func @transform_0(%arg0: i32) -> (i32, i32) {
    %c0_i32 = arith.constant 0 : i32
    %c0_i32_0 = arith.constant 0 : i32
    %c0_i32_1 = arith.constant 0 : i32
    return %c0_i32, %c0_i32_0 : i32, i32
  }
  func.func @transform_1(%arg0: i32) -> (i32, i32) {
    %c0_i32 = arith.constant 0 : i32
    %c0_i32_0 = arith.constant 0 : i32
    %c0_i32_1 = arith.constant 0 : i32
    return %c0_i32, %c0_i32_0 : i32, i32
  }
  func.func @transform_2(%arg0: i32) -> (i32, i32) {
    %c0_i32 = arith.constant 0 : i32
    %c0_i32_0 = arith.constant 0 : i32
    %c0_i32_1 = arith.constant 0 : i32
    return %c0_i32, %c0_i32_0 : i32, i32
  }
}

</mosaic_0001>

<llo_original>
// kernel: tpu_custom_call.1
$region0: #{tpu_custom_call.1}
  #allocation0 [shape = 'u32[]', space=smem, size = 0x4, offset = 0x4, fixed_abs, tag = 'smem constant byte address 0x4 - core index']
  #allocation1 [shape = 'u32[144,128]{1,0:T(1,128)}', space=vmem, size = 0x12000, scoped, tag = 'internal scratch']
  %s0 = inlined_call_operand.vmem [shape: f32[9,64], index: 0, kind: input, shape index: {}]
  %s1 = inlined_call_operand.vmem [shape: f32[200,64], index: 1, kind: input, shape index: {}]
  %s2 = inlined_call_operand.hbm [shape: f32[8,64], index: 2, kind: output, shape index: {}]
  %s3 = sld [smem:[#allocation0]]
  $region18: #{tpu_custom_call.1} parent=0
    _
  %s5 = ssub.s32 1, %s3
  %s6 = scalar_select 0, %s5, %s3
  $region1: #{tpu_custom_call.1} parent=0
    #allocation2 [shape = 'u8[4096]{0}', space=vmem, size = 0x1000, scoped, tag = 'output window, operand 0, single buffered']
    #allocation3 [shape = 's32[1]{0}', space=sflag, size = 0x4, scoped, tag = 'scoped memory for tpu_custom_call.1']
    %7 = vsyncpa [#allocation3], 0
    // Predicated region
    $region2: #{tpu_custom_call.1} parent=1 // pred_check
      _
    $region3: #{tpu_custom_call.1} parent=1 // pred_check_branch
      %9 = sbr.rel (0) target = $region5
    $region4: #{tpu_custom_call.1} parent=1 // pred_region
      _
    $region5: #{tpu_custom_call.1} parent=1 // pred_fallthru
      _
    // Predicated region
    $region6: #{tpu_custom_call.1} parent=1 // pred_check
      _
    $region7: #{tpu_custom_call.1} parent=1 // pred_check_branch
      %11 = sbr.rel (0) target = $region9
    $region8: #{tpu_custom_call.1} parent=1 // pred_region
      _
    $region9: #{tpu_custom_call.1} parent=1 // pred_fallthru
      _
    %v12 = vld [vmem:[%s0] sm:$0xff]
    %v13 = vld [vmem:[%s0 + $0x8] sm:$0x1]
    %v14 = vld [vmem:[%s1] sm:$0x1]
    %v15 = vld [vmem:[%s1 + $0x1] sm:$0x1]
    %v16 = vld [vmem:[%s1 + $0x2] sm:$0x1]
    %v17 = vld [vmem:[%s1 + $0x3] sm:$0x1]
    %v18 = vld [vmem:[%s1 + $0x4] sm:$0x1]
    %v19 = vld [vmem:[%s1 + $0x8] sm:$0xff]
    %v20 = vld [vmem:[%s1 + $0x10] sm:$0xff]
    %v21 = vld [vmem:[%s1 + $0x18] sm:$0xff]
    %v22 = vld [vmem:[%s1 + $0x20] sm:$0xff]
    %v23 = vld [vmem:[%s1 + $0x28] sm:$0xff]
    %v24 = vld [vmem:[%s1 + $0x30] sm:$0xff]
    %v25 = vld [vmem:[%s1 + $0x38] sm:$0xff]
    %v26 = vld [vmem:[%s1 + $0x40] sm:$0xff]
    %v27 = vld [vmem:[%s1 + $0x48] sm:$0xff]
    %v28 = vld [vmem:[%s1 + $0x50] sm:$0xff]
    %v29 = vld [vmem:[%s1 + $0x58] sm:$0xff]
    %v30 = vld [vmem:[%s1 + $0x60] sm:$0xff]
    %v31 = vld [vmem:[%s1 + $0x68] sm:$0xff]
    %v32 = vld [vmem:[%s1 + $0x70] sm:$0xff]
    %v33 = vld [vmem:[%s1 + $0x78] sm:$0xff]
    %v34 = vld [vmem:[%s1 + $0x80] sm:$0xff]
    %v35 = vld [vmem:[%s1 + $0x88] sm:$0xff]
    %v36 = vld [vmem:[%s1 + $0x90] sm:$0xff]
    %v37 = vld [vmem:[%s1 + $0x98] sm:$0xff]
    %v38 = vld [vmem:[%s1 + $0xa0] sm:$0xff]
    %v39 = vld [vmem:[%s1 + $0xa8] sm:$0xff]
    %v40 = vld [vmem:[%s1 + $0xb0] sm:$0xff]
    %v41 = vld [vmem:[%s1 + $0xb8] sm:$0xff]
    %v42 = vld [vmem:[%s1 + $0xc0] sm:$0xff]
    %v43 = vxor.u32 %v13, 2147483648
    %v44 = vmul.f32 %v43, 1.442695
    %v45 = vpow.pop %v44
    %v46 = vadd.f32 %v45, 1.0
    %v47 = vrcp.pop %v46
    %v48 = vmul.f32 1.0, %v47
    %v49 = vmul.f32 %v13, %v48
    %vm50 = vcmask 261120
    %v52 = vsel %vm50, %v49, 0
    %54 = vmatprep.subr.mxu0 0.0
    %55 = vmatpush1.msra.mxu0 0.0
    %56 = vmatprep.subr.mxu0 0.0
    %57 = vmatpush1.msra.mxu0 0.0
    %58 = vmatprep.subr.mxu0 0.0
    %59 = vmatpush1.msra.mxu0 0.0
    %60 = vmatprep.subr.mxu0 0.0
    %61 = vmatpush1.msra.mxu0 0.0
    %62 = vmatprep.subr.mxu0 0.0
    %63 = vmatpush1.msra.mxu0 0.0
    %64 = vmatprep.subr.mxu0 0.0
    %65 = vmatpush1.msra.mxu0 0.0
    %66 = vmatprep.subr.mxu0 0.0
    %67 = vmatpush1.msra.mxu0 0.0
    %68 = vmatprep.subr.mxu0 0.0
    %69 = vmatpush1.msra.mxu0 0.0
    %70 = vmatprep.subr.mxu0 0.0
    %71 = vmatpush1.msra.mxu0 0.0
    %72 = vmatprep.subr.mxu0 0.0
    %73 = vmatpush1.msra.mxu0 0.0
    %74 = vmatprep.subr.mxu0 0.0
    %75 = vmatpush1.msra.mxu0 0.0
    %76 = vmatprep.subr.mxu0 0.0
    %77 = vmatpush1.msra.mxu0 0.0
    %78 = vmatprep.subr.mxu0 0.0
    %79 = vmatpush1.msra.mxu0 %v38
    %80 = vmatprep.subr.mxu0 0.0
    %81 = vmatpush1.msra.mxu0 %v37
    %82 = vmatprep.subr.mxu0 0.0
    %83 = vmatpush1.msra.mxu0 %v36
    %84 = vmatprep.subr.mxu0 0.0
    %85 = vmatpush1.msra.mxu0 %v35
    %86 = vmatprep.subr.mxu0 0.0
    %87 = vmatpush2.msra.mxu0 0.0
    %88 = vmatprep.subr.mxu0 0.0
    %89 = vmatpush2.msra.mxu0 0.0
    %90 = vmatprep.subr.mxu0 0.0
    %91 = vmatpush2.msra.mxu0 0.0
    %92 = vmatprep.subr.mxu0 0.0
    %93 = vmatpush2.msra.mxu0 0.0
    %94 = vmatprep.subr.mxu0 0.0
    %95 = vmatpush2.msra.mxu0 0.0
    %96 = vmatprep.subr.mxu0 0.0
    %97 = vmatpush2.msra.mxu0 0.0
    %98 = vmatprep.subr.mxu0 0.0
    %99 = vmatpush2.msra.mxu0 0.0
    %100 = vmatprep.subr.mxu0 0.0
    %101 = vmatpush2.msra.mxu0 0.0
    %102 = vmatprep.subr.mxu0 0.0
    %103 = vmatpush2.msra.mxu0 0.0
    %104 = vmatprep.subr.mxu0 0.0
    %105 = vmatpush2.msra.mxu0 0.0
    %106 = vmatprep.subr.mxu0 0.0
    %107 = vmatpush2.msra.mxu0 0.0
    %108 = vmatprep.subr.mxu0 0.0
    %109 = vmatpush2.msra.mxu0 0.0
    %110 = vmatprep.subr.mxu0 0.0
    %111 = vmatpush2.msra.mxu0 0.0
    %112 = vmatprep.subr.mxu0 0.0
    %113 = vmatpush2.msra.mxu0 0.0
    %114 = vmatprep.subr.mxu0 0.0
    %115 = vmatpush2.msra.mxu0 0.0
    %116 = vmatprep.subr.mxu0 0.0
    %117 = vmatpush2.msra.mxu0 0.0
    %118 = vmatprep.mubr.f32.mxu0 0.0
    %119 = vmatmul.mubr.f32.gmra.mxu0 %v52
    %v120 = vpop.f32.mrf.mxu0
    %v121 = vadd.f32 %v16, %v120
    %v122 = vpop.f32.mrf.mxu0
    %123 = vdwg.mxu0
    %124 = vmatprep.subr.mxu0 0.0
    %125 = vmatpush1.msra.mxu0 0.0
    %126 = vmatprep.subr.mxu0 0.0
    %127 = vmatpush1.msra.mxu0 0.0
    %128 = vmatprep.subr.mxu0 0.0
    %129 = vmatpush1.msra.mxu0 0.0
    %130 = vmatprep.subr.mxu0 0.0
    %131 = vmatpush1.msra.mxu0 0.0
    %132 = vmatprep.subr.mxu0 0.0
    %133 = vmatpush1.msra.mxu0 0.0
    %134 = vmatprep.subr.mxu0 0.0
    %135 = vmatpush1.msra.mxu0 0.0
    %136 = vmatprep.subr.mxu0 0.0
    %137 = vmatpush1.msra.mxu0 0.0
    %138 = vmatprep.subr.mxu0 0.0
    %139 = vmatpush1.msra.mxu0 0.0
    %140 = vmatprep.subr.mxu0 0.0
    %141 = vmatpush1.msra.mxu0 0.0
    %142 = vmatprep.subr.mxu0 0.0
    %143 = vmatpush1.msra.mxu0 0.0
    %144 = vmatprep.subr.mxu0 0.0
    %145 = vmatpush1.msra.mxu0 0.0
    %146 = vmatprep.subr.mxu0 0.0
    %147 = vmatpush1.msra.mxu0 0.0
    %148 = vmatprep.subr.mxu0 0.0
    %149 = vmatpush1.msra.mxu0 %v42
    %150 = vmatprep.subr.mxu0 0.0
    %151 = vmatpush1.msra.mxu0 %v41
    %152 = vmatprep.subr.mxu0 0.0
    %153 = vmatpush1.msra.mxu0 %v40
    %154 = vmatprep.subr.mxu0 0.0
    %155 = vmatpush1.msra.mxu0 %v39
    %156 = vmatprep.subr.mxu0 0.0
    %157 = vmatpush2.msra.mxu0 0.0
    %158 = vmatprep.subr.mxu0 0.0
    %159 = vmatpush2.msra.mxu0 0.0
    %160 = vmatprep.subr.mxu0 0.0
    %161 = vmatpush2.msra.mxu0 0.0
    %162 = vmatprep.subr.mxu0 0.0
    %163 = vmatpush2.msra.mxu0 0.0
    %164 = vmatprep.subr.mxu0 0.0
    %165 = vmatpush2.msra.mxu0 0.0
    %166 = vmatprep.subr.mxu0 0.0
    %167 = vmatpush2.msra.mxu0 0.0
    %168 = vmatprep.subr.mxu0 0.0
    %169 = vmatpush2.msra.mxu0 0.0
    %170 = vmatprep.subr.mxu0 0.0
    %171 = vmatpush2.msra.mxu0 0.0
    %172 = vmatprep.subr.mxu0 0.0
    %173 = vmatpush2.msra.mxu0 0.0
    %174 = vmatprep.subr.mxu0 0.0
    %175 = vmatpush2.msra.mxu0 0.0
    %176 = vmatprep.subr.mxu0 0.0
    %177 = vmatpush2.msra.mxu0 0.0
    %178 = vmatprep.subr.mxu0 0.0
    %179 = vmatpush2.msra.mxu0 0.0
    %180 = vmatprep.subr.mxu0 0.0
    %181 = vmatpush2.msra.mxu0 0.0
    %182 = vmatprep.subr.mxu0 0.0
    %183 = vmatpush2.msra.mxu0 0.0
    %184 = vmatprep.subr.mxu0 0.0
    %185 = vmatpush2.msra.mxu0 0.0
    %186 = vmatprep.subr.mxu0 0.0
    %187 = vmatpush2.msra.mxu0 0.0
    %188 = vmatprep.mubr.f32.mxu0 0.0
    %189 = vmatmul.mubr.f32.gmra.mxu0 %v52
    %v190 = vpop.f32.mrf.mxu0
    %v191 = vadd.f32 %v17, %v190
    %v192 = vpop.f32.mrf.mxu0
    %193 = vdwg.mxu0
    %vm194 = vcmask 523264
    %v196 = vsel %vm194, %v12, 0
    %198 = vmatprep.subr.mxu0 0.0
    %199 = vmatpush1.msra.mxu0 0.0
    %200 = vmatprep.subr.mxu0 0.0
    %201 = vmatpush1.msra.mxu0 0.0
    %202 = vmatprep.subr.mxu0 0.0
    %203 = vmatpush1.msra.mxu0 0.0
    %204 = vmatprep.subr.mxu0 0.0
    %205 = vmatpush1.msra.mxu0 0.0
    %206 = vmatprep.subr.mxu0 0.0
    %207 = vmatpush1.msra.mxu0 0.0
    %208 = vmatprep.subr.mxu0 0.0
    %209 = vmatpush1.msra.mxu0 0.0
    %210 = vmatprep.subr.mxu0 0.0
    %211 = vmatpush1.msra.mxu0 0.0
    %212 = vmatprep.subr.mxu0 0.0
    %213 = vmatpush1.msra.mxu0 0.0
    %214 = vmatprep.subr.mxu0 0.0
    %215 = vmatpush1.msra.mxu0 %v26
    %216 = vmatprep.subr.mxu0 0.0
    %217 = vmatpush1.msra.mxu0 %v25
    %218 = vmatprep.subr.mxu0 0.0
    %219 = vmatpush1.msra.mxu0 %v24
    %220 = vmatprep.subr.mxu0 0.0
    %221 = vmatpush1.msra.mxu0 %v23
    %222 = vmatprep.subr.mxu0 0.0
    %223 = vmatpush1.msra.mxu0 %v22
    %224 = vmatprep.subr.mxu0 0.0
    %225 = vmatpush1.msra.mxu0 %v21
    %226 = vmatprep.subr.mxu0 0.0
    %227 = vmatpush1.msra.mxu0 %v20
    %228 = vmatprep.subr.mxu0 0.0
    %229 = vmatpush1.msra.mxu0 %v19
    %230 = vmatprep.subr.mxu0 0.0
    %231 = vmatpush2.msra.mxu0 0.0
    %232 = vmatprep.subr.mxu0 0.0
    %233 = vmatpush2.msra.mxu0 0.0
    %234 = vmatprep.subr.mxu0 0.0
    %235 = vmatpush2.msra.mxu0 0.0
    %236 = vmatprep.subr.mxu0 0.0
    %237 = vmatpush2.msra.mxu0 0.0
    %238 = vmatprep.subr.mxu0 0.0
    %239 = vmatpush2.msra.mxu0 0.0
    %240 = vmatprep.subr.mxu0 0.0
    %241 = vmatpush2.msra.mxu0 0.0
    %242 = vmatprep.subr.mxu0 0.0
    %243 = vmatpush2.msra.mxu0 0.0
    %244 = vmatprep.subr.mxu0 0.0
    %245 = vmatpush2.msra.mxu0 0.0
    %246 = vmatprep.subr.mxu0 0.0
    %247 = vmatpush2.msra.mxu0 0.0
    %248 = vmatprep.subr.mxu0 0.0
    %249 = vmatpush2.msra.mxu0 0.0
    %250 = vmatprep.subr.mxu0 0.0
    %251 = vmatpush2.msra.mxu0 0.0
    %252 = vmatprep.subr.mxu0 0.0
    %253 = vmatpush2.msra.mxu0 0.0
    %254 = vmatprep.subr.mxu0 0.0
    %255 = vmatpush2.msra.mxu0 0.0
    %256 = vmatprep.subr.mxu0 0.0
    %257 = vmatpush2.msra.mxu0 0.0
    %258 = vmatprep.subr.mxu0 0.0
    %259 = vmatpush2.msra.mxu0 0.0
    %260 = vmatprep.subr.mxu0 0.0
    %261 = vmatpush2.msra.mxu0 0.0
    %262 = vmatprep.mubr.f32.mxu0 0.0
    %263 = vmatmul.mubr.f32.gmra.mxu0 %v196
    %v264 = vpop.f32.mrf.mxu0
    %v265 = vadd.f32 0.0, %v264
    %v266 = vpop.f32.mrf.mxu0
    %267 = vdwg.mxu0
    %v268 = vsub.f32 %v12, %v265
    %v269 = vmul.f32 %v268, %v268
    %v271 = vsel %vm194, %v269, 0
    %273 = vmatprep.subr.mxu0 0.0
    %274 = vmatpush1.msra.mxu0 0.0
    %275 = vmatprep.subr.mxu0 0.0
    %276 = vmatpush1.msra.mxu0 0.0
    %277 = vmatprep.subr.mxu0 0.0
    %278 = vmatpush1.msra.mxu0 0.0
    %279 = vmatprep.subr.mxu0 0.0
    %280 = vmatpush1.msra.mxu0 0.0
    %281 = vmatprep.subr.mxu0 0.0
    %282 = vmatpush1.msra.mxu0 0.0
    %283 = vmatprep.subr.mxu0 0.0
    %284 = vmatpush1.msra.mxu0 0.0
    %285 = vmatprep.subr.mxu0 0.0
    %286 = vmatpush1.msra.mxu0 0.0
    %287 = vmatprep.subr.mxu0 0.0
    %288 = vmatpush1.msra.mxu0 0.0
    %289 = vmatprep.subr.mxu0 0.0
    %290 = vmatpush1.msra.mxu0 %v26
    %291 = vmatprep.subr.mxu0 0.0
    %292 = vmatpush1.msra.mxu0 %v25
    %293 = vmatprep.subr.mxu0 0.0
    %294 = vmatpush1.msra.mxu0 %v24
    %295 = vmatprep.subr.mxu0 0.0
    %296 = vmatpush1.msra.mxu0 %v23
    %297 = vmatprep.subr.mxu0 0.0
    %298 = vmatpush1.msra.mxu0 %v22
    %299 = vmatprep.subr.mxu0 0.0
    %300 = vmatpush1.msra.mxu0 %v21
    %301 = vmatprep.subr.mxu0 0.0
    %302 = vmatpush1.msra.mxu0 %v20
    %303 = vmatprep.subr.mxu0 0.0
    %304 = vmatpush1.msra.mxu0 %v19
    %305 = vmatprep.subr.mxu0 0.0
    %306 = vmatpush2.msra.mxu0 0.0
    %307 = vmatprep.subr.mxu0 0.0
    %308 = vmatpush2.msra.mxu0 0.0
    %309 = vmatprep.subr.mxu0 0.0
    %310 = vmatpush2.msra.mxu0 0.0
    %311 = vmatprep.subr.mxu0 0.0
    %312 = vmatpush2.msra.mxu0 0.0
    %313 = vmatprep.subr.mxu0 0.0
    %314 = vmatpush2.msra.mxu0 0.0
    %315 = vmatprep.subr.mxu0 0.0
    %316 = vmatpush2.msra.mxu0 0.0
    %317 = vmatprep.subr.mxu0 0.0
    %318 = vmatpush2.msra.mxu0 0.0
    %319 = vmatprep.subr.mxu0 0.0
    %320 = vmatpush2.msra.mxu0 0.0
    %321 = vmatprep.subr.mxu0 0.0
    %322 = vmatpush2.msra.mxu0 0.0
    %323 = vmatprep.subr.mxu0 0.0
    %324 = vmatpush2.msra.mxu0 0.0
    %325 = vmatprep.subr.mxu0 0.0
    %326 = vmatpush2.msra.mxu0 0.0
    %327 = vmatprep.subr.mxu0 0.0
    %328 = vmatpush2.msra.mxu0 0.0
    %329 = vmatprep.subr.mxu0 0.0
    %330 = vmatpush2.msra.mxu0 0.0
    %331 = vmatprep.subr.mxu0 0.0
    %332 = vmatpush2.msra.mxu0 0.0
    %333 = vmatprep.subr.mxu0 0.0
    %334 = vmatpush2.msra.mxu0 0.0
    %335 = vmatprep.subr.mxu0 0.0
    %336 = vmatpush2.msra.mxu0 0.0
    %337 = vmatprep.mubr.f32.mxu0 0.0
    %338 = vmatmul.mubr.f32.gmra.mxu0 %v271
    %v339 = vpop.f32.mrf.mxu0
    %v340 = vadd.f32 1e-05, %v339
    %v341 = vpop.f32.mrf.mxu0
    %342 = vdwg.mxu0
    %v343 = vrsqrt.pop %v340
    %v344 = vmul.f32 %v268, %v343
    %v345 = vlaneseq
    %v346 = vshrl.u32 %v345, 7
    %v347 = vsub.s32 0, %v346
    %v348 = vrot.slane %v14, %v347
    %v349 = vmul.f32 %v344, %v348
    %v350 = vlaneseq
    %v351 = vshrl.u32 %v350, 7
    %v352 = vsub.s32 0, %v351
    %v353 = vrot.slane %v15, %v352
    %v354 = vadd.f32 %v349, %v353
    %v355 = vadd.f32 %v121, 1.0
    %v356 = vlaneseq
    %v357 = vshrl.u32 %v356, 7
    %v358 = vsub.s32 0, %v357
    %v359 = vrot.slane %v355, %v358
    %v360 = vmul.f32 %v354, %v359
    %v361 = vlaneseq
    %v362 = vshrl.u32 %v361, 7
    %v363 = vsub.s32 0, %v362
    %v364 = vrot.slane %v191, %v363
    %v365 = vadd.f32 %v360, %v364
    %v366 = vxor.u32 %v365, 2147483648
    %v367 = vmul.f32 %v366, 1.442695
    %v368 = vpow.pop %v367
    %v369 = vadd.f32 %v368, 1.0
    %v370 = vrcp.pop %v369
    %v371 = vmul.f32 1.0, %v370
    %v372 = vmul.f32 %v365, %v371
    %v373 = vlaneseq
    %v374 = vshrl.u32 %v373, 7
    %v375 = vsub.s32 0, %v374
    %v376 = vrot.slane %v18, %v375
    %v378 = vsel %vm194, %v372, 0
    %380 = vmatprep.subr.mxu0 0.0
    %381 = vmatpush1.msra.mxu0 0.0
    %382 = vmatprep.subr.mxu0 0.0
    %383 = vmatpush1.msra.mxu0 0.0
    %384 = vmatprep.subr.mxu0 0.0
    %385 = vmatpush1.msra.mxu0 0.0
    %386 = vmatprep.subr.mxu0 0.0
    %387 = vmatpush1.msra.mxu0 0.0
    %388 = vmatprep.subr.mxu0 0.0
    %389 = vmatpush1.msra.mxu0 0.0
    %390 = vmatprep.subr.mxu0 0.0
    %391 = vmatpush1.msra.mxu0 0.0
    %392 = vmatprep.subr.mxu0 0.0
    %393 = vmatpush1.msra.mxu0 0.0
    %394 = vmatprep.subr.mxu0 0.0
    %395 = vmatpush1.msra.mxu0 0.0
    %396 = vmatprep.subr.mxu0 0.0
    %397 = vmatpush1.msra.mxu0 %v34
    %398 = vmatprep.subr.mxu0 0.0
    %399 = vmatpush1.msra.mxu0 %v33
    %400 = vmatprep.subr.mxu0 0.0
    %401 = vmatpush1.msra.mxu0 %v32
    %402 = vmatprep.subr.mxu0 0.0
    %403 = vmatpush1.msra.mxu0 %v31
    %404 = vmatprep.subr.mxu0 0.0
    %405 = vmatpush1.msra.mxu0 %v30
    %406 = vmatprep.subr.mxu0 0.0
    %407 = vmatpush1.msra.mxu0 %v29
    %408 = vmatprep.subr.mxu0 0.0
    %409 = vmatpush1.msra.mxu0 %v28
    %410 = vmatprep.subr.mxu0 0.0
    %411 = vmatpush1.msra.mxu0 %v27
    %412 = vmatprep.subr.mxu0 0.0
    %413 = vmatpush2.msra.mxu0 0.0
    %414 = vmatprep.subr.mxu0 0.0
    %415 = vmatpush2.msra.mxu0 0.0
    %416 = vmatprep.subr.mxu0 0.0
    %417 = vmatpush2.msra.mxu0 0.0
    %418 = vmatprep.subr.mxu0 0.0
    %419 = vmatpush2.msra.mxu0 0.0
    %420 = vmatprep.subr.mxu0 0.0
    %421 = vmatpush2.msra.mxu0 0.0
    %422 = vmatprep.subr.mxu0 0.0
    %423 = vmatpush2.msra.mxu0 0.0
    %424 = vmatprep.subr.mxu0 0.0
    %425 = vmatpush2.msra.mxu0 0.0
    %426 = vmatprep.subr.mxu0 0.0
    %427 = vmatpush2.msra.mxu0 0.0
    %428 = vmatprep.subr.mxu0 0.0
    %429 = vmatpush2.msra.mxu0 0.0
    %430 = vmatprep.subr.mxu0 0.0
    %431 = vmatpush2.msra.mxu0 0.0
    %432 = vmatprep.subr.mxu0 0.0
    %433 = vmatpush2.msra.mxu0 0.0
    %434 = vmatprep.subr.mxu0 0.0
    %435 = vmatpush2.msra.mxu0 0.0
    %436 = vmatprep.subr.mxu0 0.0
    %437 = vmatpush2.msra.mxu0 0.0
    %438 = vmatprep.subr.mxu0 0.0
    %439 = vmatpush2.msra.mxu0 0.0
    %440 = vmatprep.subr.mxu0 0.0
    %441 = vmatpush2.msra.mxu0 0.0
    %442 = vmatprep.subr.mxu0 0.0
    %443 = vmatpush2.msra.mxu0 0.0
    %444 = vmatprep.mubr.f32.mxu0 0.0
    %445 = vmatmul.mubr.f32.gmra.mxu0 %v378
    %v446 = vpop.f32.mrf.mxu0
    %v447 = vadd.f32 %v376, %v446
    %v448 = vpop.f32.mrf.mxu0
    %449 = vdwg.mxu0
    %450 = vst.msk [vmem:[#allocation2] sm:$0xff] %vm194, %v447
    // Predicated region
    $region10: #{tpu_custom_call.1} parent=1 // pred_check
      _
    $region11: #{tpu_custom_call.1} parent=1 // pred_check_branch
      %452 = sbr.rel (0) target = $region13
    $region12: #{tpu_custom_call.1} parent=1 // pred_region
      %s454 = ssub.s32 128, 128
      %455 = vsyncadd [#allocation3], %s454
      %s457 = sshll.u32 [#allocation2], 4
      %s458 = int_to_ptr.vmem [resolvable:$true] %s457
      %460 = dma.vmem_to_hbm [thread:$0]  %s458, 128, %s2, [#allocation3]
    $region13: #{tpu_custom_call.1} parent=1 // pred_fallthru
      _
    // Predicated region
    $region14: #{tpu_custom_call.1} parent=1 // pred_check
      _
    $region15: #{tpu_custom_call.1} parent=1 // pred_check_branch
      %462 = sbr.rel (0) target = $region17
    $region16: #{tpu_custom_call.1} parent=1 // pred_region
      %463 = dma.done [#allocation3], 128
    $region17: #{tpu_custom_call.1} parent=1 // pred_fallthru
      _
    %464 = vsyncpa [#allocation3], 1

</llo_original>
